<compile_context>
chip_gen: v6e
topology: v6e:2x2x1
jax: 0.10.0
libtpu: 0.0.40
codegen_flags: <defaults>
</compile_context>

<pallas_src>
import functools
import math

import jax
import jax.numpy as jnp
from jax.experimental import pallas as pl
from jax.experimental.pallas import tpu as pltpu


# ----------------------- generation-aware VMEM / tile targets ---------------------
def _tpu_vmem_capacity_bytes():
    try:
        info = pltpu.get_tpu_info()
        cap = getattr(info, "vmem_capacity_bytes", None)
        if cap:
            return int(cap)
    except Exception:
        pass
    return 64 * 1024 * 1024  # conservative default (v7x per-TC VMEM)


_VMEM_CAP = _tpu_vmem_capacity_bytes()
_LARGE_VMEM = _VMEM_CAP >= 96 * 1024 * 1024          # v5e / v6e (128 MiB)
_VMEM_LIMIT = (64 if _LARGE_VMEM else 32) * 1024 * 1024
_TM_TARGET = 512 if _LARGE_VMEM else 256
_TN_TARGET = 512 if _LARGE_VMEM else 256
_TK_TARGET = 512
_TQ_TARGET = 512 if _LARGE_VMEM else 256
_TKV_TARGET = 512 if _LARGE_VMEM else 256


def _pick_tile(dim, target, align):
    """Largest tile <= target that divides dim and is `align`-aligned, else full dim."""
    if dim <= target:
        return dim
    t = (target // align) * align
    while t >= align:
        if dim % t == 0:
            return t
        t -= align
    return dim


# --------------------- tiled linear kernel: y = x @ W_t + b -----------------------
def _linear_kernel(x_ref, w_ref, b_ref, o_ref, acc_ref, *, mxu_dtype):
    k = pl.program_id(2)

    @pl.when(k == 0)
    def _():
        acc_ref[...] = jnp.zeros_like(acc_ref)

    x = x_ref[...]
    w = w_ref[...]
    if mxu_dtype is not None:
        # bf16 MXU operands, f32 accumulation (v6e/v7x bf16-native MXU).
        x = x.astype(mxu_dtype)
        w = w.astype(mxu_dtype)
    acc_ref[...] += jnp.dot(x, w, preferred_element_type=jnp.float32)

    @pl.when(k == pl.num_programs(2) - 1)
    def _():
        o_ref[...] = (acc_ref[...] + b_ref[...].astype(jnp.float32)).astype(o_ref.dtype)


def pallas_linear(x, w_t, b, *, tm_target=None, tn_target=None, tk_target=None,
                  use_bf16_mxu=True):
    """x: (M, K); w_t: (K, Nout) [pre-transposed once at param-prep]; b: (Nout,)."""
    M, K = x.shape
    Nout = w_t.shape[1]
    if tm_target is None:
        tm_target = _TM_TARGET
    if tn_target is None:
        tn_target = _TN_TARGET
    if tk_target is None:
        tk_target = _TK_TARGET
    sub_align = 16 if x.dtype == jnp.bfloat16 else 8
    tm = _pick_tile(M, tm_target, sub_align)
    tn = _pick_tile(Nout, tn_target, 128)
    tk = _pick_tile(K, tk_target, 128)
    grid = (M // tm, Nout // tn, K // tk)
    mxu_dtype = jnp.bfloat16 if (use_bf16_mxu and x.dtype == jnp.float32) else None
    kernel = functools.partial(_linear_kernel, mxu_dtype=mxu_dtype)
    return pl.pallas_call(
        kernel,
        out_shape=jax.ShapeDtypeStruct((M, Nout), x.dtype),
        grid=grid,
        in_specs=[
            pl.BlockSpec((tm, tk), lambda i, j, k: (i, k)),
            pl.BlockSpec((tk, tn), lambda i, j, k: (k, j)),
            pl.BlockSpec((1, tn), lambda i, j, k: (0, j)),
        ],
        out_specs=pl.BlockSpec((tm, tn), lambda i, j, k: (i, j)),
        scratch_shapes=[pltpu.VMEM((tm, tn), jnp.float32)],
        compiler_params=pltpu.CompilerParams(
            dimension_semantics=("parallel", "parallel", "arbitrary"),
            vmem_limit_bytes=_VMEM_LIMIT),
    )(x, w_t, b.reshape(1, Nout))


# ------------- flash attention over the packed 'b n (h d)' layout -----------------
def _flash_attn_kernel(q_ref, k_ref, v_ref, o_ref, m_ref, l_ref, acc_ref, qs_ref, *,
                       hblk, d, approx, mxu_dtype):
    ki = pl.program_id(3)

    @pl.when(ki == 0)
    def _():
        m_ref[...] = jnp.full_like(m_ref, -jnp.inf)
        l_ref[...] = jnp.zeros_like(l_ref)
        acc_ref[...] = jnp.zeros_like(acc_ref)
        # q head-group slices are invariant across the KV axis: slice (+ cast to
        # the MXU dtype) once per (b, h, qi) block instead of every ki step.
        for hh in range(hblk):
            qs_ref[hh] = q_ref[0, :, hh * d:(hh + 1) * d].astype(qs_ref.dtype)

    # Static unroll over the heads packed in this block (lane slices are static).
    for hh in range(hblk):
        sl = slice(hh * d, (hh + 1) * d)
        kt = k_ref[0, :, sl]                                  # (tk, d)
        vt = v_ref[0, :, sl]                                  # (tk, d)
        if mxu_dtype is not None:
            kt = kt.astype(mxu_dtype)
        q = qs_ref[hh]                                        # (tq, d), scale pre-folded
        # q @ k.T without an explicit transpose: contract last dims on the MXU.
        s = jax.lax.dot_general(
            q, kt, dimension_numbers=(((1,), (1,)), ((), ())),
            preferred_element_type=jnp.float32)               # (tq, tk), f32
        m_prev = m_ref[hh]                                     # (tq, 1)
        m_new = jnp.maximum(m_prev, jnp.max(s, axis=-1, keepdims=True))
        alpha = jnp.exp(m_prev - m_new)                        # (tq, 1)
        p = jnp.exp(s - m_new)                                 # (tq, tk)
        l_ref[hh] = alpha * l_ref[hh] + jnp.sum(p, axis=-1, keepdims=True)
        pv_dtype = mxu_dtype if mxu_dtype is not None else vt.dtype
        acc_ref[hh] = alpha * acc_ref[hh] + jnp.dot(
            p.astype(pv_dtype), vt.astype(pv_dtype),
            preferred_element_type=jnp.float32)
        m_ref[hh] = m_new

    @pl.when(ki == pl.num_programs(3) - 1)
    def _():
        outs = []
        for hh in range(hblk):
            inv_l = pl.reciprocal(l_ref[hh], approx=approx)
            outs.append(acc_ref[hh] * inv_l)
        # One lane-dense store of the whole (tq, hblk*d) output slab.
        o_ref[0] = jnp.concatenate(outs, axis=-1).astype(o_ref.dtype)


def _pick_head_block(n_head, d_head):
    # All heads in one block if the packed width is modest; else a head group
    # whose packed width is a multiple of 128 lanes (and divides n_head).
    if n_head * d_head <= 512:
        return n_head
    for hb in range(n_head, 0, -1):
        if n_head % hb:
            continue
        hd = hb * d_head
        if hd <= 512 and hd % 128 == 0:
            return hb
    return n_head  # fallback: full packed width always satisfies block constraints


def pallas_attention(q, k, v, n_head, d_head, *,
                     q_head_offset=0, k_head_offset=0, v_head_offset=0,
                     tq_target=None, tk_target=None,
                     approx_recip=False, use_bf16_mxu=True):
    """Flash attention on packed 'b n (h d)' tensors.

    q/k/v may be the SAME packed (B, N, 3*n_head*d) QKV projection: head group h
    of the query/key/value is addressed at head offset {0, n_head, 2*n_head}
    purely through the BlockSpec index_map (no wrapper slicing / HBM copies).
    1/sqrt(d) is assumed to be pre-folded into the q projection weights.
    Returns (B, Nq, n_head*d_head).
    """
    B, Nq = q.shape[0], q.shape[1]
    Nk = k.shape[1]
    D = n_head * d_head
    hblk = _pick_head_block(n_head, d_head)
    hd = hblk * d_head
    assert q_head_offset % hblk == 0 and k_head_offset % hblk == 0 \
        and v_head_offset % hblk == 0
    q_boff = q_head_offset // hblk
    k_boff = k_head_offset // hblk
    v_boff = v_head_offset // hblk

    if tq_target is None:
        tq_target = _TQ_TARGET
    if tk_target is None:
        tk_target = _TKV_TARGET
    sub_align = 16 if q.dtype == jnp.bfloat16 else 8
    tq = _pick_tile(Nq, tq_target, sub_align)
    tk = _pick_tile(Nk, tk_target, sub_align)
    # v7x megacore: keep >=2-way work on the parallel axes so neither TC idles.
    if B * (n_head // hblk) * (Nq // tq) < 2 and Nq % (2 * sub_align) == 0:
        tq = _pick_tile(Nq, max(sub_align, tq // 2), sub_align)

    mxu_dtype = jnp.bfloat16 if (use_bf16_mxu and q.dtype == jnp.float32) else None
    qs_dtype = mxu_dtype if mxu_dtype is not None else q.dtype

    grid = (B, n_head // hblk, Nq // tq, Nk // tk)   # KV axis last -> "arbitrary"
    kernel = functools.partial(_flash_attn_kernel, hblk=hblk, d=d_head,
                               approx=approx_recip, mxu_dtype=mxu_dtype)
    q_spec = pl.BlockSpec((1, tq, hd), lambda b, h, qi, ki: (b, qi, h + q_boff))
    k_spec = pl.BlockSpec((1, tk, hd), lambda b, h, qi, ki: (b, ki, h + k_boff))
    v_spec = pl.BlockSpec((1, tk, hd), lambda b, h, qi, ki: (b, ki, h + v_boff))
    return pl.pallas_call(
        kernel,
        out_shape=jax.ShapeDtypeStruct((B, Nq, D), q.dtype),
        grid=grid,
        in_specs=[q_spec, k_spec, v_spec],
        out_specs=pl.BlockSpec((1, tq, hd), lambda b, h, qi, ki: (b, qi, h)),
        scratch_shapes=[
            pltpu.VMEM((hblk, tq, 1), jnp.float32),        # running max  m
            pltpu.VMEM((hblk, tq, 1), jnp.float32),        # running sum  l
            pltpu.VMEM((hblk, tq, d_head), jnp.float32),   # output accumulator
            pltpu.VMEM((hblk, tq, d_head), qs_dtype),      # hoisted q slices
        ],
        compiler_params=pltpu.CompilerParams(
            dimension_semantics=("parallel", "parallel", "parallel", "arbitrary"),
            vmem_limit_bytes=_VMEM_LIMIT),
    )(q, k, v)


# ------------------------------ module equivalent ---------------------------------
def init_mha_params(key, d_model, n_head, dtype=jnp.float32):
    """torch nn.Linear-layout parameters (w: (out, in))."""
    d_k = d_model // n_head
    keys = jax.random.split(key, 8)

    def lin(kw, kb, out_f, in_f):
        bound = 1.0 / math.sqrt(in_f)
        w = jax.random.uniform(kw, (out_f, in_f), dtype, -bound, bound)
        b = jax.random.uniform(kb, (out_f,), dtype, -bound, bound)
        return w, b

    w_q, b_q = lin(keys[0], keys[1], n_head * d_k, d_model)
    w_k, b_k = lin(keys[2], keys[3], n_head * d_k, d_model)
    w_v, b_v = lin(keys[4], keys[5], n_head * d_k, d_model)
    w_o, b_o = lin(keys[6], keys[7], d_model, n_head * d_k)
    return dict(w_q=w_q, b_q=b_q, w_k=w_k, b_k=b_k,
                w_v=w_v, b_v=b_v, w_o=w_o, b_o=b_o)


def prepare_mha_params(params, n_head):
    """One-time (outside the per-call path) kernel-ready parameter prep:
       - transpose weights to (K, N) matmul layout,
       - fuse Q/K/V weights/biases for the self-attention path,
       - fold 1/sqrt(d_k) into the q projection (weights AND bias)."""
    d_model = params["w_q"].shape[1]
    d_k = d_model // n_head
    scale = jnp.asarray(1.0 / math.sqrt(d_k), params["w_q"].dtype)
    w_qs = params["w_q"] * scale
    b_qs = params["b_q"] * scale
    return dict(
        # fused QKV projection (self-attention): activation read once, 3x wider N
        w_qkv_t=jnp.concatenate([w_qs, params["w_k"], params["w_v"]], axis=0).T,
        b_qkv=jnp.concatenate([b_qs, params["b_k"], params["b_v"]], axis=0),
        # separate projections (distinct q/k/v inputs)
        w_q_t=w_qs.T, b_q=b_qs,
        w_k_t=params["w_k"].T, b_k=params["b_k"],
        w_v_t=params["w_v"].T, b_v=params["b_v"],
        # output projection
        w_o_t=params["w_o"].T, b_o=params["b_o"],
    )


def multi_headed_attention(prepared, query, key, value, n_head, *,
                           fuse_qkv=None, approx_recip=False, use_bf16_mxu=True):
    """Forward pass of MultiHeadedAttention (use_quantum=False, eval mode).

    `prepared` is the output of prepare_mha_params (fused/transposed/scale-folded
    weights, built once outside the per-call path).
    """
    B, N, D = query.shape
    d = D // n_head
    if fuse_qkv is None:  # auto: fuse projections for self-attention
        fuse_qkv = (query is key) and (key is value)

    if fuse_qkv:
        # One wide matmul instead of three: activation read once, 3x wider N.
        qkv = pallas_linear(query.reshape(B * N, D), prepared["w_qkv_t"],
                            prepared["b_qkv"], use_bf16_mxu=use_bf16_mxu)
        qkv = qkv.reshape(B, N, 3 * D)
        hblk = _pick_head_block(n_head, d)
        if (hblk * d) % 128 == 0:
            # Feed the packed (B, N, 3D) projection straight into the attention
            # kernel; q/k/v head groups are selected via BlockSpec lane-block
            # offsets -> no wrapper slices, no extra HBM round trip.
            out = pallas_attention(
                qkv, qkv, qkv, n_head, d,
                q_head_offset=0, k_head_offset=n_head, v_head_offset=2 * n_head,
                approx_recip=approx_recip, use_bf16_mxu=use_bf16_mxu)
        else:
            # Tiny, non-128-lane-aligned head-group width (small d_model): the
            # slice copies are negligible and keep BlockSpec constraints valid.
            q = qkv[..., :D]
            k = qkv[..., D:2 * D]
            v = qkv[..., 2 * D:]
            out = pallas_attention(q, k, v, n_head, d,
                                   approx_recip=approx_recip,
                                   use_bf16_mxu=use_bf16_mxu)
    else:
        q = pallas_linear(query.reshape(B * N, D), prepared["w_q_t"],
                          prepared["b_q"], use_bf16_mxu=use_bf16_mxu).reshape(B, N, D)
        k = pallas_linear(key.reshape(B * N, D), prepared["w_k_t"],
                          prepared["b_k"], use_bf16_mxu=use_bf16_mxu).reshape(B, N, D)
        v = pallas_linear(value.reshape(B * N, D), prepared["w_v_t"],
                          prepared["b_v"], use_bf16_mxu=use_bf16_mxu).reshape(B, N, D)
        out = pallas_attention(q, k, v, n_head, d,
                               approx_recip=approx_recip,
                               use_bf16_mxu=use_bf16_mxu)

    # Heads stay packed as 'b q (h d)': no split/merge transposes anywhere.
    out = pallas_linear(out.reshape(B * N, D), prepared["w_o_t"], prepared["b_o"],
                        use_bf16_mxu=use_bf16_mxu)
    # Dropout is identity in eval mode.
    # TODO(synk): training-mode dropout masking not implemented (eval-mode identity).
    return out.reshape(B, N, D)


# ----------------------------------- checks ---------------------------------------
def ref_forward(p, q_in, k_in, v_in, n_head):
    B, N, D = q_in.shape
    d = D // n_head

    def lin(x, w, b):
        return x @ w.T + b

    def split(x):
        return x.reshape(B, N, n_head, d).transpose(0, 2, 1, 3)

    q = split(lin(q_in, p["w_q"], p["b_q"]))
    k = split(lin(k_in, p["w_k"], p["b_k"]))
    v = split(lin(v_in, p["w_v"], p["b_v"]))
    s = jnp.einsum("bhqd,bhkd->bhqk", q, k) / jnp.sqrt(jnp.float32(d))
    a = jax.nn.softmax(s, axis=-1)
    o = jnp.einsum("bhqk,bhkd->bhqd", a, v)
    o = o.transpose(0, 2, 1, 3).reshape(B, N, D)
    return lin(o, p["w_o"], p["b_o"])


if __name__ == "__main__":
    # --- small shapes consistent with the module ---
    B, N, D, H = 2, 8, 32, 4       # batch, seq, d_model, n_head
    root = jax.random.PRNGKey(0)
    kp, kx, kq, kk, kv = jax.random.split(root, 5)

    params = init_mha_params(kp, D, H)
    prepared = prepare_mha_params(params, H)        # one-time weight prep (hoisted)
    x = jax.random.normal(kx, (B, N, D), jnp.float32)

    # 1) self-attention -> fused QKV projection, bf16 MXU operands (inference-grade)
    out_fused = jax.block_until_ready(multi_headed_attention(prepared, x, x, x, H))
    ref_fused = ref_forward(params, x, x, x, H)
    assert out_fused.shape == (B, N, D)
    assert jnp.allclose(out_fused, ref_fused, atol=3e-2, rtol=3e-2)

    # 2) distinct q/k/v -> separate projections, exact f32 MXU + exact reciprocal
    #    (tight numerical check of the kernel math)
    query = jax.random.normal(kq, (B, N, D), jnp.float32)
    key_ = jax.random.normal(kk, (B, N, D), jnp.float32)
    value = jax.random.normal(kv, (B, N, D), jnp.float32)
    out = jax.block_until_ready(multi_headed_attention(
        prepared, query, key_, value, H, use_bf16_mxu=False, approx_recip=False))
    ref = ref_forward(params, query, key_, value, H)
    assert jnp.allclose(out, ref, atol=1e-4, rtol=1e-4)

    # 3) larger shape exercising the real tiling: multi-block linear grid, the
    #    direct packed-QKV attention path (lane-block offsets), multiple KV tiles
    #    -> online-softmax rescaling path, bf16 MXU operands.
    B2, N2, D2, H2 = 2, 384, 256, 4
    kp2, kx2 = jax.random.split(jax.random.PRNGKey(1), 2)
    params2 = init_mha_params(kp2, D2, H2)
    prepared2 = prepare_mha_params(params2, H2)
    x2 = jax.random.normal(kx2, (B2, N2, D2), jnp.float32)
    out2 = jax.block_until_ready(multi_headed_attention(prepared2, x2, x2, x2, H2))
    ref2 = ref_forward(params2, x2, x2, x2, H2)
    assert jnp.allclose(out2, ref2, atol=3e-2, rtol=3e-2)

    print("KERNEL_OK")
</pallas_src>

<mosaic_0001>
module attributes {stable_mosaic.version = 11 : i64} {
  func.func @_linear_kernel(%arg0: i32, %arg1: i32, %arg2: i32, %arg3: memref<16x32xf32, #tpu.memory_space<vmem>>, %arg4: memref<32x96xf32, #tpu.memory_space<vmem>>, %arg5: memref<1x96xf32, #tpu.memory_space<vmem>>, %arg6: memref<16x96xf32, #tpu.memory_space<vmem>>, %arg7: memref<16x96xf32, #tpu.memory_space<vmem>>) attributes {dimension_semantics = [#tpu.dimension_semantics<parallel>, #tpu.dimension_semantics<parallel>, #tpu.dimension_semantics<arbitrary>], iteration_bounds = array<i64: 1, 1, 1>, scalar_prefetch = 0 : i64, scratch_operands = 1 : i64, tpu.core_type = #tpu.core_type<tc>, window_params = [{transform_indices = @transform_0, window_bounds = array<i64: 16, 32>}, {transform_indices = @transform_1, window_bounds = array<i64: 32, 96>}, {transform_indices = @transform_2, window_bounds = array<i64: 1, 96>}, {transform_indices = @transform_3, window_bounds = array<i64: 16, 96>}]} {
    %c0_i32 = arith.constant 0 : i32
    %0 = arith.cmpi eq, %arg2, %c0_i32 : i32
    %1 = arith.extui %0 : i1 to i32
    %c0_i32_0 = arith.constant 0 : i32
    %2 = arith.cmpi ne, %1, %c0_i32_0 : i32
    scf.if %2 {
      %cst_10 = arith.constant 0.000000e+00 : f32
      %14 = vector.broadcast %cst_10 : f32 to vector<16x96xf32>
      %c0_11 = arith.constant 0 : index
      %c0_12 = arith.constant 0 : index
      %15 = vector.load %arg7[%c0_11, %c0_12] : memref<16x96xf32, #tpu.memory_space<vmem>>, vector<16x96xf32>
      tpu.vector_store %arg7[%c0_11, %c0_12], %14 {strides = array<i32>} : memref<16x96xf32, #tpu.memory_space<vmem>>, vector<16x96xf32>,
    } else {
    }
    %c0 = arith.constant 0 : index
    %c0_1 = arith.constant 0 : index
    %3 = vector.load %arg3[%c0, %c0_1] : memref<16x32xf32, #tpu.memory_space<vmem>>, vector<16x32xf32>
    %c0_2 = arith.constant 0 : index
    %c0_3 = arith.constant 0 : index
    %4 = vector.load %arg4[%c0_2, %c0_3] : memref<32x96xf32, #tpu.memory_space<vmem>>, vector<32x96xf32>
    %5 = arith.truncf %3 : vector<16x32xf32> to vector<16x32xbf16>
    %6 = arith.truncf %4 : vector<32x96xf32> to vector<32x96xbf16>
    %c0_4 = arith.constant 0 : index
    %c0_5 = arith.constant 0 : index
    %7 = vector.load %arg7[%c0_4, %c0_5] : memref<16x96xf32, #tpu.memory_space<vmem>>, vector<16x96xf32>
    %cst = arith.constant dense<0.000000e+00> : vector<16x96xf32>
    %8 = tpu.matmul %5, %6, %cst {dimension_numbers = #tpu.dot_dimension_numbers<[1], [0], [0], [1], [0, 0, 1, 1], [], []>} : vector<16x32xbf16>, vector<32x96xbf16>, vector<16x96xf32> -> vector<16x96xf32>
    %9 = arith.addf %7, %8 : vector<16x96xf32>
    %c0_6 = arith.constant 0 : index
    %c0_7 = arith.constant 0 : index
    %10 = vector.load %arg7[%c0_6, %c0_7] : memref<16x96xf32, #tpu.memory_space<vmem>>, vector<16x96xf32>
    tpu.vector_store %arg7[%c0_6, %c0_7], %9 {strides = array<i32>} : memref<16x96xf32, #tpu.memory_space<vmem>>, vector<16x96xf32>,
    %c0_i32_8 = arith.constant 0 : i32
    %11 = arith.cmpi eq, %arg2, %c0_i32_8 : i32
    %12 = arith.extui %11 : i1 to i32
    %c0_i32_9 = arith.constant 0 : i32
    %13 = arith.cmpi ne, %12, %c0_i32_9 : i32
    scf.if %13 {
      %c0_10 = arith.constant 0 : index
      %c0_11 = arith.constant 0 : index
      %14 = vector.load %arg7[%c0_10, %c0_11] : memref<16x96xf32, #tpu.memory_space<vmem>>, vector<16x96xf32>
      %c0_12 = arith.constant 0 : index
      %c0_13 = arith.constant 0 : index
      %15 = vector.load %arg5[%c0_12, %c0_13] : memref<1x96xf32, #tpu.memory_space<vmem>>, vector<1x96xf32>
      %16 = vector.broadcast %15 : vector<1x96xf32> to vector<16x96xf32>
      %17 = arith.addf %14, %16 : vector<16x96xf32>
      %c0_14 = arith.constant 0 : index
      %c0_15 = arith.constant 0 : index
      %18 = vector.load %arg6[%c0_14, %c0_15] : memref<16x96xf32, #tpu.memory_space<vmem>>, vector<16x96xf32>
      tpu.vector_store %arg6[%c0_14, %c0_15], %17 {strides = array<i32>} : memref<16x96xf32, #tpu.memory_space<vmem>>, vector<16x96xf32>,
    } else {
    }
    return
  }
  func.func @transform_0(%arg0: i32, %arg1: i32, %arg2: i32) -> (i32, i32) {
    %c0_i32 = arith.constant 0 : i32
    return %arg0, %arg2 : i32, i32
  }
  func.func @transform_1(%arg0: i32, %arg1: i32, %arg2: i32) -> (i32, i32) {
    %c0_i32 = arith.constant 0 : i32
    return %arg2, %arg1 : i32, i32
  }
  func.func @transform_2(%arg0: i32, %arg1: i32, %arg2: i32) -> (i32, i32) {
    %c0_i32 = arith.constant 0 : i32
    %c0_i32_0 = arith.constant 0 : i32
    return %c0_i32, %arg1 : i32, i32
  }
  func.func @transform_3(%arg0: i32, %arg1: i32, %arg2: i32) -> (i32, i32) {
    %c0_i32 = arith.constant 0 : i32
    return %arg0, %arg1 : i32, i32
  }
}

</mosaic_0001>

<llo_original>
// kernel: tpu_custom_call.1
$region0: #{tpu_custom_call.1}
  #allocation0 [shape = 'u32[]', space=smem, size = 0x4, offset = 0x4, fixed_abs, tag = 'smem constant byte address 0x4 - core index']
  #allocation1 [shape = 'u32[144,128]{1,0:T(1,128)}', space=vmem, size = 0x12000, scoped, tag = 'internal scratch']
  #allocation2 [shape = 'f32[16,96]{1,0:T(8,128)}', space=vmem, size = 0x2000, scoped, tag = 'scratch operand']
  %s0 = inlined_call_operand.hbm [shape: f32[16,32], index: 0, kind: input, shape index: {}]
  %s1 = inlined_call_operand.hbm [shape: f32[32,96], index: 1, kind: input, shape index: {}]
  %s2 = inlined_call_operand.vmem [shape: f32[1,96], index: 2, kind: input, shape index: {}]
  %s3 = inlined_call_operand.hbm [shape: f32[16,96], index: 3, kind: output, shape index: {}]
  %s4 = sld [smem:[#allocation0]]
  $region38: #{tpu_custom_call.1} parent=0
    _
  %s6 = ssub.s32 1, %s4
  %s7 = scalar_select 0, %s6, %s4
  $region1: #{tpu_custom_call.1} parent=0
    #allocation3 [shape = 'u8[8192]{0}', space=vmem, size = 0x2000, scoped, tag = 'input window, operand 0, single buffered']
    #allocation4 [shape = 's32[1]{0}', space=sflag, size = 0x4, scoped, tag = 'scoped memory for tpu_custom_call.1']
    #allocation5 [shape = 's32[1]{0}', space=sflag, size = 0x4, scoped, tag = 'scoped memory for tpu_custom_call.1']
    #allocation6 [shape = 'u8[16384]{0}', space=vmem, size = 0x4000, scoped, tag = 'input window, operand 1, single buffered']
    #allocation7 [shape = 's32[1]{0}', space=sflag, size = 0x4, scoped, tag = 'scoped memory for tpu_custom_call.1']
    #allocation8 [shape = 'u8[8192]{0}', space=vmem, size = 0x2000, scoped, tag = 'output window, operand 0, single buffered']
    %8 = vsyncpa [#allocation4], 0
    %9 = vsyncpa [#allocation7], 0
    %10 = vsyncpa [#allocation5], 0
    // Predicated region
    $region2: #{tpu_custom_call.1} parent=1 // pred_check
      _
    $region3: #{tpu_custom_call.1} parent=1 // pred_check_branch
      %12 = sbr.rel (0) target = $region5
    $region4: #{tpu_custom_call.1} parent=1 // pred_region
      %s14 = ssub.s32 256, 256
      %15 = vsyncadd [#allocation4], %s14
      %s16 = sshll.u32 [#allocation3], 4
      %s17 = int_to_ptr.vmem [resolvable:$true] %s16
      %22 = dma.hbm_to_vmem [thread:$0]  %s0, 256, %s17, [#allocation4], 128, 128, 8
    $region5: #{tpu_custom_call.1} parent=1 // pred_fallthru
      _
    // Predicated region
    $region6: #{tpu_custom_call.1} parent=1 // pred_check
      _
    $region7: #{tpu_custom_call.1} parent=1 // pred_check_branch
      %24 = sbr.rel (0) target = $region9
    $region8: #{tpu_custom_call.1} parent=1 // pred_region
      %s26 = ssub.s32 512, 512
      %27 = vsyncadd [#allocation7], %s26
      %s28 = sshll.u32 [#allocation6], 4
      %s29 = int_to_ptr.vmem [resolvable:$true] %s28
      %34 = dma.hbm_to_vmem [thread:$0]  %s1, 512, %s29, [#allocation7], 128, 128, 8
    $region9: #{tpu_custom_call.1} parent=1 // pred_fallthru
      _
    // Predicated region
    $region10: #{tpu_custom_call.1} parent=1 // pred_check
      _
    $region11: #{tpu_custom_call.1} parent=1 // pred_check_branch
      %36 = sbr.rel (0) target = $region13
    $region12: #{tpu_custom_call.1} parent=1 // pred_region
      _
    $region13: #{tpu_custom_call.1} parent=1 // pred_fallthru
      _
    // Predicated region
    $region14: #{tpu_custom_call.1} parent=1 // pred_check
      _
    $region15: #{tpu_custom_call.1} parent=1 // pred_check_branch
      %38 = sbr.rel (0) target = $region17
    $region16: #{tpu_custom_call.1} parent=1 // pred_region
      %39 = dma.done [#allocation4], 256
    $region17: #{tpu_custom_call.1} parent=1 // pred_fallthru
      _
    // Predicated region
    $region18: #{tpu_custom_call.1} parent=1 // pred_check
      _
    $region19: #{tpu_custom_call.1} parent=1 // pred_check_branch
      %41 = sbr.rel (0) target = $region21
    $region20: #{tpu_custom_call.1} parent=1 // pred_region
      %42 = dma.done [#allocation7], 512
    $region21: #{tpu_custom_call.1} parent=1 // pred_fallthru
      _
    %p44 = scmp.eq.s32.totalorder 0, 0
    // Predicated region
    $region22: #{tpu_custom_call.1} parent=1 // pred_check
      %p45 = pneg %p44
    $region23: #{tpu_custom_call.1} parent=1 // pred_check_branch
      %47 = sbr.rel (%p45) target = $region25
    $region24: #{tpu_custom_call.1} parent=1 // pred_region
      %vm48 = vcmask 785408
      %49 = vst.msk [vmem:[#allocation2] sm:$0xff] %vm48, 0.0
      %50 = vst.msk [vmem:[#allocation2 + $0x8] sm:$0xff] %vm48, 0.0
    $region25: #{tpu_custom_call.1} parent=1 // pred_fallthru
      _
    %v51 = vld [vmem:[#allocation3] sm:$0xff]
    %v52 = vld [vmem:[#allocation3 + $0x8] sm:$0xff]
    %v53 = vld [vmem:[#allocation6] sm:$0xff]
    %v54 = vld [vmem:[#allocation6 + $0x8] sm:$0xff]
    %v55 = vld [vmem:[#allocation6 + $0x10] sm:$0xff]
    %v56 = vld [vmem:[#allocation6 + $0x18] sm:$0xff]
    %v57 = vpack.c.bf16 %v52, %v51
    %v58 = vpack.c.bf16 %v54, %v53
    %v59 = vpack.c.bf16 %v56, %v55
    %v60 = vld [vmem:[#allocation2] sm:$0xff]
    %v61 = vld [vmem:[#allocation2 + $0x8] sm:$0xff]
    %vm62 = vcmask 261120
    %v64 = vsel %vm62, %v57, 0
    %66 = vmatprep.subr.bf16.mxu0 0
    %67 = vmatpush1.bf16.msra.mxu0 0
    %68 = vmatprep.subr.bf16.mxu0 0
    %69 = vmatpush1.bf16.msra.mxu0 0
    %70 = vmatprep.subr.bf16.mxu0 0
    %71 = vmatpush1.bf16.msra.mxu0 0
    %72 = vmatprep.subr.bf16.mxu0 0
    %73 = vmatpush1.bf16.msra.mxu0 0
    %74 = vmatprep.subr.bf16.mxu0 0
    %75 = vmatpush1.bf16.msra.mxu0 0
    %76 = vmatprep.subr.bf16.mxu0 0
    %77 = vmatpush1.bf16.msra.mxu0 0
    %78 = vmatprep.subr.bf16.mxu0 0
    %79 = vmatpush1.bf16.msra.mxu0 %v59
    %80 = vmatprep.subr.bf16.mxu0 0
    %81 = vmatpush1.bf16.msra.mxu0 %v58
    %82 = vmatprep.subr.bf16.mxu0 0
    %83 = vmatpush2.bf16.msra.mxu0 0
    %84 = vmatprep.subr.bf16.mxu0 0
    %85 = vmatpush2.bf16.msra.mxu0 0
    %86 = vmatprep.subr.bf16.mxu0 0
    %87 = vmatpush2.bf16.msra.mxu0 0
    %88 = vmatprep.subr.bf16.mxu0 0
    %89 = vmatpush2.bf16.msra.mxu0 0
    %90 = vmatprep.subr.bf16.mxu0 0
    %91 = vmatpush2.bf16.msra.mxu0 0
    %92 = vmatprep.subr.bf16.mxu0 0
    %93 = vmatpush2.bf16.msra.mxu0 0
    %94 = vmatprep.subr.bf16.mxu0 0
    %95 = vmatpush2.bf16.msra.mxu0 0
    %96 = vmatprep.subr.bf16.mxu0 0
    %97 = vmatpush2.bf16.msra.mxu0 0
    %98 = vmatprep.mubr.bf16.mxu0 0
    %99 = vmatmul.mubr.bf16.gmra.mxu0 %v64
    %v100 = vpop.f32.mrf.mxu0
    %v101 = vadd.f32 0.0, %v100
    %v102 = vpop.f32.mrf.mxu0
    %v103 = vpop.f32.mrf.mxu0
    %v104 = vadd.f32 0.0, %v103
    %v105 = vpop.f32.mrf.mxu0
    %106 = vdwg.mxu0
    %v107 = vadd.f32 %v60, %v101
    %v108 = vadd.f32 %v61, %v104
    %vm109 = vcmask 785408
    %110 = vst.msk [vmem:[#allocation2] sm:$0xff] %vm109, %v107
    %111 = vst.msk [vmem:[#allocation2 + $0x8] sm:$0xff] %vm109, %v108
    // Predicated region
    $region26: #{tpu_custom_call.1} parent=1 // pred_check
      %p112 = pneg %p44
    $region27: #{tpu_custom_call.1} parent=1 // pred_check_branch
      %114 = sbr.rel (%p112) target = $region29
    $region28: #{tpu_custom_call.1} parent=1 // pred_region
      %v115 = vld [vmem:[#allocation2] sm:$0xff]
      %v116 = vld [vmem:[#allocation2 + $0x8] sm:$0xff]
      %v117 = vld [vmem:[%s2] sm:$0x1]
      %v119 = vlaneseq
      %v120 = vshrl.u32 %v119, 7
      %v121 = vsub.s32 0, %v120
      %v122 = vrot.slane %v117, %v121
      %v124 = vadd.f32 %v115, %v122
      %v125 = vadd.f32 %v116, %v122
      %126 = vst.msk [vmem:[#allocation8] sm:$0xff] %vm109, %v124
      %127 = vst.msk [vmem:[#allocation8 + $0x8] sm:$0xff] %vm109, %v125
    $region29: #{tpu_custom_call.1} parent=1 // pred_fallthru
      _
    // Predicated region
    $region30: #{tpu_custom_call.1} parent=1 // pred_check
      _
    $region31: #{tpu_custom_call.1} parent=1 // pred_check_branch
      %129 = sbr.rel (0) target = $region33
    $region32: #{tpu_custom_call.1} parent=1 // pred_region
      %s131 = ssub.s32 256, 256
      %132 = vsyncadd [#allocation5], %s131
      %s133 = sshll.u32 [#allocation8], 4
      %s134 = int_to_ptr.vmem [resolvable:$true] %s133
      %139 = dma.vmem_to_hbm [thread:$0]  %s134, 256, %s3, [#allocation5], 128, 128, 8
    $region33: #{tpu_custom_call.1} parent=1 // pred_fallthru
      _
    // Predicated region
    $region34: #{tpu_custom_call.1} parent=1 // pred_check
      _
    $region35: #{tpu_custom_call.1} parent=1 // pred_check_branch
      %141 = sbr.rel (0) target = $region37
    $region36: #{tpu_custom_call.1} parent=1 // pred_region
      %142 = dma.done [#allocation5], 256
    $region37: #{tpu_custom_call.1} parent=1 // pred_fallthru
      _
    %143 = vsyncpa [#allocation4], 1
    %144 = vsyncpa [#allocation7], 1
    %145 = vsyncpa [#allocation5], 1

</llo_original>
